<compile_context>
chip_gen: v7x
topology: tpu7x:2x2x1
jax: 0.10.0
libtpu: 0.0.40
codegen_flags: <defaults>
</compile_context>

<pallas_src>
import jax
import jax.numpy as jnp
import numpy as np
from jax import lax
from jax.experimental import pallas as pl
from jax.experimental.pallas import tpu as pltpu


# ---------------------------------------------------------------------------
# Phase 1: 3x3 conv as a single (Cmid, 9C) @ (9C, TN) MXU matmul per tile,
#          plus per-tile partial BN statistics.
# ---------------------------------------------------------------------------
def _conv3x3_stats_kernel(patch_ref, w_ref, act_ref, psum_ref, psumsq_ref):
    # patch_ref : (9C, TN)    bf16   im2col columns, lane-dense spatial axis
    # w_ref     : (Cmid, 9C)  bf16   3x3 weights with all taps stacked along K
    # act_ref   : (Cmid, TN)  bf16   conv output (pre-BN, bias dropped)
    # psum_ref  : (1, Cmid, 1) f32   per-tile per-channel sum
    # psumsq_ref: (1, Cmid, 1) f32   per-tile per-channel sum of squares
    acc = jnp.dot(w_ref[...], patch_ref[...],
                  preferred_element_type=jnp.float32)          # (Cmid, TN) f32
    act_ref[...] = acc.astype(act_ref.dtype)                   # bf16 HBM round trip
    # Lane reduction done once per tile (not per row) -> 2 XLU reduces / tile.
    psum_ref[0] = jnp.sum(acc, axis=1, keepdims=True)
    psumsq_ref[0] = jnp.sum(acc * acc, axis=1, keepdims=True)


# ---------------------------------------------------------------------------
# Phase 2: folded BN + ReLU + 1x1 conv epilogue (VPU math, lane-dense store).
# ---------------------------------------------------------------------------
def _bn_relu_pw_kernel(act_ref, scale_ref, shift_ref, w1_ref, b1_ref, out_ref):
    # act_ref  : (Cmid, TN) bf16
    # scale_ref: (Cmid, 1)  f32   gamma * rsqrt(var + eps)   (precomputed once)
    # shift_ref: (Cmid, 1)  f32   beta  - mean * scale
    # w1_ref   : (Cmid, 1)  f32   1x1 conv weights
    # b1_ref   : (1, 1)     f32   1x1 conv bias
    # out_ref  : (1, TN)    f32   lane-dense output tile
    a = act_ref[...].astype(jnp.float32)          # f32 vector math (v5e-safe)
    z = jnp.maximum(a * scale_ref[...] + shift_ref[...], 0.0) * w1_ref[...]
    # Cmid (<=8) sits on sublanes: a single cheap sublane reduce per vreg,
    # then a lane-dense (1, TN) store (no masked partial stores).
    out_ref[...] = jnp.sum(z, axis=0, keepdims=True) + b1_ref[...]


def _pick_tile(n):
    """Lane-dense spatial tile: multiple of 128, >=2 tiles when possible."""
    for t in (1024, 512, 256, 128):
        if n >= 2 * t and n % t == 0:
            return t
    return n


# ---------------------------------------------------------------------------
# Wrapper: layout plumbing (im2col, transposes) + BN finalize in plain JAX.
# ---------------------------------------------------------------------------
def conv_block_forward(x, w3, b3, gamma, beta, w1, b1, *, eps=1e-5):
    """ConvBlock forward.  x: [B, C, H, W] (NCHW) -> [B, 1, H, W] (NCHW)."""
    del b3  # conv bias in front of train-mode BN cancels exactly (see header)
    B, C, H, W = x.shape
    cmid = w3.shape[0]
    f32, bf16 = jnp.float32, jnp.bfloat16
    HW = H * W
    N = B * HW

    # ---- wrapper-side layout plumbing (no compute hoisted) -----------------
    # Zero-pad (padding=1) and materialize the 9 shifted windows once, so the
    # kernel sees a lane-dense (9C, B*H*W) im2col slab and never touches the
    # XLU for unaligned lane slices. Flattening order matches
    # w3.reshape(Cmid, C*9): (c, kh, kw) along K and (b, h, w) along N.
    xp = jnp.pad(x.astype(f32), ((0, 0), (0, 0), (1, 1), (1, 1)))
    cols = [xp[:, :, kh:kh + H, kw:kw + W] for kh in range(3) for kw in range(3)]
    patches = jnp.stack(cols, axis=2).reshape(B, C * 9, HW)         # [B, 9C, HW]
    patches = jnp.transpose(patches, (1, 0, 2)).reshape(C * 9, N)   # [9C, B*HW]
    patches = patches.astype(bf16)                                  # native MXU dtype
    w9 = w3.astype(f32).reshape(cmid, C * 9).astype(bf16)           # [Cmid, 9C]

    tn = _pick_tile(N)
    n_t = N // tn
    grid = (n_t,)
    cparams = pltpu.CompilerParams(
        dimension_semantics=("parallel",),       # no cross-step carry anywhere
        vmem_limit_bytes=32 * 1024 * 1024,       # explicit, v7x 64 MiB safe
    )

    act, psum, psumsq = pl.pallas_call(
        _conv3x3_stats_kernel,
        grid=grid,
        in_specs=[
            pl.BlockSpec((C * 9, tn), lambda t: (0, t)),
            pl.BlockSpec((cmid, C * 9), lambda t: (0, 0)),
        ],
        out_specs=(
            pl.BlockSpec((cmid, tn), lambda t: (0, t)),
            pl.BlockSpec((1, cmid, 1), lambda t: (t, 0, 0)),
            pl.BlockSpec((1, cmid, 1), lambda t: (t, 0, 0)),
        ),
        out_shape=(
            jax.ShapeDtypeStruct((cmid, N), bf16),       # bf16 HBM round trip
            jax.ShapeDtypeStruct((n_t, cmid, 1), f32),
            jax.ShapeDtypeStruct((n_t, cmid, 1), f32),
        ),
        compiler_params=cparams,
    )(patches, w9)

    # ---- phase boundary: finalize train-mode BN stats once per channel -----
    # (E[x^2] - E[x]^2 in f32; clamped at 0.  For very large images / large DC
    #  offsets a shifted/two-pass variance would bound cancellation error.)
    n_elems = float(N)
    s = jnp.sum(psum[:, :, 0], axis=0)                    # [Cmid]
    ss = jnp.sum(psumsq[:, :, 0], axis=0)                 # [Cmid]
    mean = s / n_elems
    var = jnp.maximum(ss / n_elems - mean * mean, 0.0)    # biased (PyTorch train)
    inv_std = lax.rsqrt(var + eps)
    g = gamma.astype(f32)
    scale = (g * inv_std).reshape(cmid, 1)
    shift = (beta.astype(f32) - mean * g * inv_std).reshape(cmid, 1)
    w1c = w1.astype(f32).reshape(cmid, 1)                 # [1, Cmid, 1, 1] -> [Cmid, 1]
    b1c = b1.astype(f32).reshape(1, 1)

    y = pl.pallas_call(
        _bn_relu_pw_kernel,
        grid=grid,
        in_specs=[
            pl.BlockSpec((cmid, tn), lambda t: (0, t)),
            pl.BlockSpec((cmid, 1), lambda t: (0, 0)),
            pl.BlockSpec((cmid, 1), lambda t: (0, 0)),
            pl.BlockSpec((cmid, 1), lambda t: (0, 0)),
            pl.BlockSpec((1, 1), lambda t: (0, 0)),
        ],
        out_specs=pl.BlockSpec((1, tn), lambda t: (0, t)),
        out_shape=jax.ShapeDtypeStruct((1, N), f32),
        compiler_params=cparams,
    )(act, scale, shift, w1c, b1c)

    # Lane-dense (1, B*H*W) -> NCHW [B, 1, H, W] (wrapper reshape, no copy cost
    # inside the kernel).
    return y.reshape(B, 1, H, W)


# ---------------------------------------------------------------------------
# Pure-JAX reference (mirrors the PyTorch module in train mode).
# ---------------------------------------------------------------------------
def conv_block_reference(x, w3, b3, gamma, beta, w1, b1, *, eps=1e-5):
    x = x.astype(jnp.float32)
    y = lax.conv_general_dilated(
        x, w3.astype(jnp.float32), window_strides=(1, 1),
        padding=((1, 1), (1, 1)),
        dimension_numbers=("NCHW", "OIHW", "NCHW"))
    y = y + b3[None, :, None, None]
    mean = jnp.mean(y, axis=(0, 2, 3), keepdims=True)
    var = jnp.mean((y - mean) ** 2, axis=(0, 2, 3), keepdims=True)   # biased
    y = (y - mean) * lax.rsqrt(var + eps)
    y = y * gamma[None, :, None, None] + beta[None, :, None, None]
    y = jnp.maximum(y, 0.0)
    out = lax.conv_general_dilated(
        y, w1.astype(jnp.float32), window_strides=(1, 1), padding="VALID",
        dimension_numbers=("NCHW", "OIHW", "NCHW"))
    return out + b1[None, :, None, None]


if __name__ == "__main__":
    key = jax.random.PRNGKey(0)
    B, C, H, W = 2, 8, 16, 16
    cmid = C // 2
    ks = jax.random.split(key, 7)

    x = jax.random.normal(ks[0], (B, C, H, W), jnp.float32)
    w3 = jax.random.normal(ks[1], (cmid, C, 3, 3), jnp.float32) * 0.1
    b3 = jax.random.normal(ks[2], (cmid,), jnp.float32) * 0.1
    gamma = 1.0 + 0.1 * jax.random.normal(ks[3], (cmid,), jnp.float32)
    beta = 0.1 * jax.random.normal(ks[4], (cmid,), jnp.float32)
    w1 = jax.random.normal(ks[5], (1, cmid, 1, 1), jnp.float32) * 0.1
    b1 = jax.random.normal(ks[6], (1,), jnp.float32) * 0.1

    out = jax.block_until_ready(conv_block_forward(x, w3, b3, gamma, beta, w1, b1))
    assert out.shape == (B, 1, H, W), out.shape

    ref = jax.block_until_ready(conv_block_reference(x, w3, b3, gamma, beta, w1, b1))
    err = float(jnp.max(jnp.abs(out - ref)))
    # Tolerance covers bf16 MXU operands / bf16 intermediate activation
    # (f32 accumulation everywhere) vs the f32 XLA reference conv.
    if not np.isfinite(err) or err > 5e-2:
        raise AssertionError(f"Pallas ConvBlock mismatch: max abs err = {err}")
    print("KERNEL_OK")
</pallas_src>

<mosaic_0001>
module attributes {stable_mosaic.version = 11 : i64} {
  func.func @_conv3x3_stats_kernel(%arg0: i32, %arg1: memref<72x256xbf16, #tpu.memory_space<vmem>>, %arg2: memref<4x72xbf16, #tpu.memory_space<vmem>>, %arg3: memref<4x256xbf16, #tpu.memory_space<vmem>>, %arg4: memref<1x4x1xf32, #tpu.memory_space<vmem>>, %arg5: memref<1x4x1xf32, #tpu.memory_space<vmem>>) attributes {dimension_semantics = [#tpu.dimension_semantics<parallel>], iteration_bounds = array<i64: 2>, scalar_prefetch = 0 : i64, scratch_operands = 0 : i64, tpu.core_type = #tpu.core_type<tc>, window_params = [{transform_indices = @transform_0, window_bounds = array<i64: 72, 256>}, {pipeline_mode = #tpu.pipeline_mode<synchronous>, transform_indices = @transform_1, window_bounds = array<i64: 4, 72>}, {transform_indices = @transform_2, window_bounds = array<i64: 4, 256>}, {transform_indices = @transform_3, window_bounds = array<i64: 1, 4, 1>}, {transform_indices = @transform_4, window_bounds = array<i64: 1, 4, 1>}]} {
    %c0 = arith.constant 0 : index
    %c0_0 = arith.constant 0 : index
    %0 = vector.load %arg2[%c0, %c0_0] : memref<4x72xbf16, #tpu.memory_space<vmem>>, vector<4x72xbf16>
    %c0_1 = arith.constant 0 : index
    %c0_2 = arith.constant 0 : index
    %1 = vector.load %arg1[%c0_1, %c0_2] : memref<72x256xbf16, #tpu.memory_space<vmem>>, vector<72x256xbf16>
    %cst = arith.constant dense<0.000000e+00> : vector<4x256xf32>
    %2 = tpu.matmul %0, %1, %cst {dimension_numbers = #tpu.dot_dimension_numbers<[1], [0], [0], [1], [0, 0, 1, 1], [], []>} : vector<4x72xbf16>, vector<72x256xbf16>, vector<4x256xf32> -> vector<4x256xf32>
    %3 = arith.truncf %2 : vector<4x256xf32> to vector<4x256xbf16>
    %c0_3 = arith.constant 0 : index
    %c0_4 = arith.constant 0 : index
    %4 = vector.load %arg3[%c0_3, %c0_4] : memref<4x256xbf16, #tpu.memory_space<vmem>>, vector<4x256xbf16>
    tpu.vector_store %arg3[%c0_3, %c0_4], %3 {strides = array<i32>} : memref<4x256xbf16, #tpu.memory_space<vmem>>, vector<4x256xbf16>,
    %cst_5 = arith.constant dense<0.000000e+00> : vector<4xf32>
    %5 = vector.multi_reduction <add>, %2, %cst_5 [1] : vector<4x256xf32> to vector<4xf32>
    %6 = vector.shape_cast %5 : vector<4xf32> to vector<4x1xf32>
    %c0_6 = arith.constant 0 : index
    %c0_7 = arith.constant 0 : index
    %c0_8 = arith.constant 0 : index
    %7 = vector.load %arg4[%c0_6, %c0_7, %c0_8] : memref<1x4x1xf32, #tpu.memory_space<vmem>>, vector<1x4x1xf32>
    %8 = vector.shape_cast %7 : vector<1x4x1xf32> to vector<4x1xf32>
    %9 = vector.shape_cast %6 : vector<4x1xf32> to vector<1x4x1xf32>
    tpu.vector_store %arg4[%c0_6, %c0_7, %c0_8], %9 {strides = array<i32>} : memref<1x4x1xf32, #tpu.memory_space<vmem>>, vector<1x4x1xf32>,
    %10 = arith.mulf %2, %2 : vector<4x256xf32>
    %cst_9 = arith.constant dense<0.000000e+00> : vector<4xf32>
    %11 = vector.multi_reduction <add>, %10, %cst_9 [1] : vector<4x256xf32> to vector<4xf32>
    %12 = vector.shape_cast %11 : vector<4xf32> to vector<4x1xf32>
    %c0_10 = arith.constant 0 : index
    %c0_11 = arith.constant 0 : index
    %c0_12 = arith.constant 0 : index
    %13 = vector.load %arg5[%c0_10, %c0_11, %c0_12] : memref<1x4x1xf32, #tpu.memory_space<vmem>>, vector<1x4x1xf32>
    %14 = vector.shape_cast %13 : vector<1x4x1xf32> to vector<4x1xf32>
    %15 = vector.shape_cast %12 : vector<4x1xf32> to vector<1x4x1xf32>
    tpu.vector_store %arg5[%c0_10, %c0_11, %c0_12], %15 {strides = array<i32>} : memref<1x4x1xf32, #tpu.memory_space<vmem>>, vector<1x4x1xf32>,
    return
  }
  func.func @transform_0(%arg0: i32) -> (i32, i32) {
    %c0_i32 = arith.constant 0 : i32
    %c0_i32_0 = arith.constant 0 : i32
    return %c0_i32, %arg0 : i32, i32
  }
  func.func @transform_1(%arg0: i32) -> (i32, i32) {
    %c0_i32 = arith.constant 0 : i32
    %c0_i32_0 = arith.constant 0 : i32
    %c0_i32_1 = arith.constant 0 : i32
    return %c0_i32, %c0_i32_0 : i32, i32
  }
  func.func @transform_2(%arg0: i32) -> (i32, i32) {
    %c0_i32 = arith.constant 0 : i32
    %c0_i32_0 = arith.constant 0 : i32
    return %c0_i32, %arg0 : i32, i32
  }
  func.func @transform_3(%arg0: i32) -> (i32, i32, i32) {
    %c0_i32 = arith.constant 0 : i32
    %c0_i32_0 = arith.constant 0 : i32
    %c0_i32_1 = arith.constant 0 : i32
    return %arg0, %c0_i32, %c0_i32_0 : i32, i32, i32
  }
  func.func @transform_4(%arg0: i32) -> (i32, i32, i32) {
    %c0_i32 = arith.constant 0 : i32
    %c0_i32_0 = arith.constant 0 : i32
    %c0_i32_1 = arith.constant 0 : i32
    return %arg0, %c0_i32, %c0_i32_0 : i32, i32, i32
  }
}

</mosaic_0001>

<llo_original>
// kernel: tpu_custom_call.1
$region0: #{tpu_custom_call.1}
  #allocation0 [shape = 'u32[]', space=smem, size = 0x4, offset = 0x4, fixed_abs, tag = 'smem constant byte address 0x4 - core index']
  #allocation1 [shape = 'u32[144,128]{1,0:T(1,128)}', space=vmem, size = 0x12000, scoped, tag = 'internal scratch']
  %s0 = inlined_call_operand.hbm [shape: bf16[72,512], index: 0, kind: input, shape index: {}]
  %s1 = inlined_call_operand.vmem [shape: bf16[4,72], index: 1, kind: input, shape index: {}]
  %s2 = inlined_call_operand.hbm [shape: bf16[4,512], index: 2, kind: output, shape index: {0}]
  %s3 = inlined_call_operand.vmem [shape: f32[2,4,1], index: 3, kind: output, shape index: {1}]
  %s4 = inlined_call_operand.vmem [shape: f32[2,4,1], index: 4, kind: output, shape index: {2}]
  %5 = xla_tuple %s2, %s3, %s4
  %s6 = sld [smem:[#allocation0]]
  $region61: #{tpu_custom_call.1} parent=0
    _
  %s8 = ssub.s32 1, %s6
  %s9 = scalar_select 0, %s8, %s6
  $region1: #{tpu_custom_call.1} parent=0
    #allocation2 [shape = 'u8[73728]{0}', space=vmem, size = 0x12000, scoped, tag = 'input window, operand 0']
    #allocation3 [shape = 's32[2]{0}', space=sflag, size = 0x8, scoped, tag = 'scoped memory for tpu_custom_call.1']
    #allocation4 [shape = 's32[2]{0}', space=sflag, size = 0x8, scoped, tag = 'scoped memory for tpu_custom_call.1']
    #allocation5 [shape = 'u8[4096]{0}', space=vmem, size = 0x1000, scoped, tag = 'output window, operand 0']
    %10 = vsyncpa [#allocation3], 0
    %s11 = scalar_lea.sflag [#allocation3], 1
    %12 = vsyncpa %s11, 0
    %13 = vsyncpa [#allocation4], 0
    %s14 = scalar_lea.sflag [#allocation4], 1
    %15 = vsyncpa %s14, 0
    loop: start=0, step=1, limit=4
    $region2: #{tpu_custom_call.1} parent=1 // loop_pre_header
      _
    $region3: #{tpu_custom_call.1} parent=1 // loop_header
      %s17 = sphi 0, %s21
      %p18 = scmp.ge.s32.totalorder %s17, 4
      %s27 = sphi 0, %s29
      %s30 = sphi 0, %s27
      %s31 = sphi 0, %s30
      %s47 = sphi 0, %s31
      %s51 = sphi 0, %s51
      %s53 = sphi 0, %s51
      %s54 = sphi 0, %s53
      %s68 = sphi 0, %s54
      %s74 = sphi 0, %s76
      %s77 = sphi 0, %s74
      %s78 = sphi 0, %s77
      %s94 = sphi 0, %s78
      %s100 = sphi 0, %s102
      %s103 = sphi 0, %s100
      %s104 = sphi 0, %s103
      %s120 = sphi 0, %s104
      %s126 = sphi 0, %s128
      %s129 = sphi 0, %s126
      %s130 = sphi 0, %s129
      %s146 = sphi 0, %s130
    $region4: #{tpu_custom_call.1} parent=1 // loop_header_branch
      %20 = sbr.rel (%p18) target = $region8
    $region5: #{tpu_custom_call.1} parent=1 // loop_body
      %s22 = ssub.s32 %s17, 1
      %s23 = ssub.s32 %s17, 2
      %s24 = sadd.s32 %s17, 1
      %s25 = ssub.s32 %s17, %s24
      %p26 = scmp.eq.s32.totalorder %s25, 0
      %s28 = sadd.s32 %s27, 1
      %s29 = scalar_select %p26, %s27, %s28
      %p32 = pneg %p26
      %p33 = scmp.eq.s32.totalorder %s17, 1
      %p34 = por %p32, %p33
      %p35 = scmp.ne.s32.totalorder %s27, %s30
      %p36 = scmp.eq.s32.totalorder %s17, 0
      %p37 = por %p35, %p36
      %p38 = scmp.ne.s32.totalorder %s27, %s30
      %p39 = scmp.eq.s32.totalorder %s22, 1
      %p40 = por %p38, %p39
      %p41 = scmp.ne.s32.totalorder %s30, %s31
      %p42 = scmp.eq.s32.totalorder %s22, 0
      %p43 = por %p41, %p42
      %p44 = scmp.ne.s32.totalorder %s30, %s31
      %p45 = scmp.eq.s32.totalorder %s23, 1
      %p46 = por %p44, %p45
      %p48 = scmp.ne.s32.totalorder %s31, %s47
      %p49 = scmp.eq.s32.totalorder %s23, 0
      %p50 = por %p48, %p49
      %s52 = sadd.s32 %s51, 1
      %p55 = scmp.eq.s32.totalorder %s17, 1
      %p56 = scmp.ne.s32.totalorder %s51, %s53
      %p57 = scmp.eq.s32.totalorder %s17, 0
      %p58 = por %p56, %p57
      %p59 = scmp.ne.s32.totalorder %s51, %s53
      %p60 = scmp.eq.s32.totalorder %s22, 1
      %p61 = por %p59, %p60
      %p62 = scmp.ne.s32.totalorder %s53, %s54
      %p63 = scmp.eq.s32.totalorder %s22, 0
      %p64 = por %p62, %p63
      %p65 = scmp.ne.s32.totalorder %s53, %s54
      %p66 = scmp.eq.s32.totalorder %s23, 1
      %p67 = por %p65, %p66
      %p69 = scmp.ne.s32.totalorder %s54, %s68
      %p70 = scmp.eq.s32.totalorder %s23, 0
      %p71 = por %p69, %p70
      %s72 = ssub.s32 %s17, %s24
      %p73 = scmp.eq.s32.totalorder %s72, 0
      %s75 = sadd.s32 %s74, 1
      %s76 = scalar_select %p73, %s74, %s75
      %p79 = pneg %p73
      %p80 = scmp.eq.s32.totalorder %s17, 1
      %p81 = por %p79, %p80
      %p82 = scmp.ne.s32.totalorder %s74, %s77
      %p83 = scmp.eq.s32.totalorder %s17, 0
      %p84 = por %p82, %p83
      %p85 = scmp.ne.s32.totalorder %s74, %s77
      %p86 = scmp.eq.s32.totalorder %s22, 1
      %p87 = por %p85, %p86
      %p88 = scmp.ne.s32.totalorder %s77, %s78
      %p89 = scmp.eq.s32.totalorder %s22, 0
      %p90 = por %p88, %p89
      %p91 = scmp.ne.s32.totalorder %s77, %s78
      %p92 = scmp.eq.s32.totalorder %s23, 1
      %p93 = por %p91, %p92
      %p95 = scmp.ne.s32.totalorder %s78, %s94
      %p96 = scmp.eq.s32.totalorder %s23, 0
      %p97 = por %p95, %p96
      %s98 = ssub.s32 %s17, %s24
      %p99 = scmp.eq.s32.totalorder %s98, 0
      %s101 = sadd.s32 %s100, 1
      %s102 = scalar_select %p99, %s100, %s101
      %p105 = pneg %p99
      %p106 = scmp.eq.s32.totalorder %s17, 1
      %p107 = por %p105, %p106
      %p108 = scmp.ne.s32.totalorder %s100, %s103
      %p109 = scmp.eq.s32.totalorder %s17, 0
      %p110 = por %p108, %p109
      %p111 = scmp.ne.s32.totalorder %s100, %s103
      %p112 = scmp.eq.s32.totalorder %s22, 1
      %p113 = por %p111, %p112
      %p114 = scmp.ne.s32.totalorder %s103, %s104
      %p115 = scmp.eq.s32.totalorder %s22, 0
      %p116 = por %p114, %p115
      %p117 = scmp.ne.s32.totalorder %s103, %s104
      %p118 = scmp.eq.s32.totalorder %s23, 1
      %p119 = por %p117, %p118
      %p121 = scmp.ne.s32.totalorder %s104, %s120
      %p122 = scmp.eq.s32.totalorder %s23, 0
      %p123 = por %p121, %p122
      %s124 = ssub.s32 %s17, %s24
      %p125 = scmp.eq.s32.totalorder %s124, 0
      %s127 = sadd.s32 %s126, 1
      %s128 = scalar_select %p125, %s126, %s127
      %p131 = pneg %p125
      %p132 = scmp.eq.s32.totalorder %s17, 1
      %p133 = por %p131, %p132
      %p134 = scmp.ne.s32.totalorder %s126, %s129
      %p135 = scmp.eq.s32.totalorder %s17, 0
      %p136 = por %p134, %p135
      %p137 = scmp.ne.s32.totalorder %s126, %s129
      %p138 = scmp.eq.s32.totalorder %s22, 1
      %p139 = por %p137, %p138
      %p140 = scmp.ne.s32.totalorder %s129, %s130
      %p141 = scmp.eq.s32.totalorder %s22, 0
      %p142 = por %p140, %p141
      %p143 = scmp.ne.s32.totalorder %s129, %s130
      %p144 = scmp.eq.s32.totalorder %s23, 1
      %p145 = por %p143, %p144
      %p147 = scmp.ne.s32.totalorder %s130, %s146
      %p148 = scmp.eq.s32.totalorder %s23, 0
      %p149 = por %p147, %p148
      %p150 = scmp.le.s32.totalorder 1, %s17
      %p151 = scmp.lt.s32.totalorder %s17, 3
      %p152 = pnand %p150, %p151
      %p153 = pneg %p152
      // Predicated region
      $region9: #{tpu_custom_call.1} parent=5 // pred_check
        _
      $region10: #{tpu_custom_call.1} parent=5 // pred_check_branch
        %155 = sbr.rel (%p152) target = $region12
      $region11: #{tpu_custom_call.1} parent=5 // pred_region
        %s156 = ssub.s32 %s17, 1
        // Predicated region
        $region13: #{tpu_custom_call.1} parent=11 // pred_check
          %p157 = pneg %p64
        $region14: #{tpu_custom_call.1} parent=11 // pred_check_branch
          %159 = sbr.rel (%p157) target = $region16
        $region15: #{tpu_custom_call.1} parent=11 // pred_region
          _
        $region16: #{tpu_custom_call.1} parent=11 // pred_fallthru
          _
      $region12: #{tpu_custom_call.1} parent=5 // pred_fallthru
        _
      %p160 = scmp.lt.s32.totalorder %s17, 2
      // Predicated region
      $region17: #{tpu_custom_call.1} parent=5 // pred_check
        %p161 = pneg %p160
      $region18: #{tpu_custom_call.1} parent=5 // pred_check_branch
        %163 = sbr.rel (%p161) target = $region20
      $region19: #{tpu_custom_call.1} parent=5 // pred_region
        // Predicated region
        $region21: #{tpu_custom_call.1} parent=19 // pred_check
          %p164 = pneg %p37
        $region22: #{tpu_custom_call.1} parent=19 // pred_check_branch
          %166 = sbr.rel (%p164) target = $region24
        $region23: #{tpu_custom_call.1} parent=19 // pred_region
          %s167 = sand.u32 %s27, 1
          %s168 = scalar_lea.sflag [#allocation3], %s167
          %s169 = sand.u32 %s27, 1
          %s170 = smul.addr %s169, 72
          %s171 = scalar_lea.vmem [#allocation2], %s170
          %s172 = smul.u32 2, %s17
          %s174 = ssub.s32 1152, 1152
          %175 = vsyncadd %s168, %s174
          %s176 = smul.addr %s172, 64
          %s177 = scalar_lea.hbm %s0, %s176
          %s178 = sshll.u32 %s171, 4
          %s179 = int_to_ptr.vmem [resolvable:$true] %s178
          %184 = dma.hbm_to_vmem [thread:$0]  %s177, 1152, %s179, %s168, 256, 128, 8
        $region24: #{tpu_custom_call.1} parent=19 // pred_fallthru
          _
      $region20: #{tpu_custom_call.1} parent=5 // pred_fallthru
        _
      %p185 = scmp.le.s32.totalorder 1, %s17
      %p186 = scmp.lt.s32.totalorder %s17, 3
      %p187 = pnand %p185, %p186
      %p188 = pneg %p187
      // Predicated region
      $region25: #{tpu_custom_call.1} parent=5 // pred_check
        _
      $region26: #{tpu_custom_call.1} parent=5 // pred_check_branch
        %190 = sbr.rel (%p187) target = $region28
      $region27: #{tpu_custom_call.1} parent=5 // pred_region
        %s191 = ssub.s32 %s17, 1
        %s192 = sand.u32 %s30, 1
        %s193 = scalar_lea.sflag [#allocation3], %s192
        %s194 = sand.u32 %s30, 1
        %s195 = smul.addr %s194, 72
        %s196 = scalar_lea.vmem [#allocation2], %s195
        // Predicated region
        $region29: #{tpu_custom_call.1} parent=27 // pred_check
          %p197 = pneg %p43
        $region30: #{tpu_custom_call.1} parent=27 // pred_check_branch
          %199 = sbr.rel (%p197) target = $region32
        $region31: #{tpu_custom_call.1} parent=27 // pred_region
          %200 = dma.done %s193, 1152
        $region32: #{tpu_custom_call.1} parent=27 // pred_fallthru
          _
        %s201 = sand.u32 %s30, 1
        %s202 = scalar_lea.sflag [#allocation3], %s201
        %s203 = sand.u32 %s30, 1
        %s204 = smul.addr %s203, 72
        %s205 = scalar_lea.vmem [#allocation2], %s204
        %p206 = pneg %p43
        %p207 = pneg %p40
        %p208 = pneg %p64
        %p209 = pneg %p61
        %p210 = pneg %p90
        %p211 = pneg %p87
        %s212 = sand.u32 %s77, 1
        %s213 = scalar_lea.sflag [#allocation4], %s212
        %s214 = sand.u32 %s77, 1
        %s215 = smul.addr %s214, 4
        %s216 = scalar_lea.vmem [#allocation5], %s215
        %p217 = pneg %p116
        %p218 = pneg %p113
        %p219 = scmp.lt.s32.totalorder %s22, 1
        %s220 = scalar_select %p219, %s22, 1
        %s221 = smul.addr %s220, 4
        %s222 = scalar_lea.vmem %s3, %s221
        %p223 = pneg %p142
        %p224 = pneg %p139
        %p225 = scmp.lt.s32.totalorder %s22, 1
        %s226 = scalar_select %p225, %s22, 1
        %s227 = smul.addr %s226, 4
        %s228 = scalar_lea.vmem %s4, %s227
        %s229 = smul.u32 2, %s22
        %s230 = smul.u32 2, %s22
        %p231 = scmp.lt.s32.totalorder %s22, 1
        %s232 = scalar_select %p231, %s22, 1
        %s233 = smul.addr %s232, 4
        %s234 = scalar_lea.vmem %s3, %s233
        %p235 = scmp.lt.s32.totalorder %s22, 1
        %s236 = scalar_select %p235, %s22, 1
        %s237 = smul.addr %s236, 4
        %s238 = scalar_lea.vmem %s4, %s237
        %v240 = vld [vmem:[%s1] sm:$0x3]
        %v241 = vld [vmem:[%s196] sm:$0xff]
        %v242 = vld [vmem:[%s196 + $0x8] sm:$0xff]
        %v243 = vld [vmem:[%s196 + $0x10] sm:$0xff]
        %v244 = vld [vmem:[%s196 + $0x18] sm:$0xff]
        %v245 = vld [vmem:[%s196 + $0x20] sm:$0xff]
        %v246 = vld [vmem:[%s196 + $0x28] sm:$0xff]
        %v247 = vld [vmem:[%s196 + $0x30] sm:$0xff]
        %v248 = vld [vmem:[%s196 + $0x38] sm:$0xff]
        %v249 = vld [vmem:[%s196 + $0x40] sm:$0xff]
        %v259 = vunpack.c.l.b16 %v241
        %v260 = vunpack.c.h.b16 %v241
        %v261 = vunpack.c.l.b16 %v242
        %v262 = vunpack.c.h.b16 %v242
        %v263 = vunpack.c.l.b16 %v243
        %v264 = vunpack.c.h.b16 %v243
        %v265 = vunpack.c.l.b16 %v244
        %v266 = vunpack.c.h.b16 %v244
        %v267 = vunpack.c.l.b16 %v245
        %v268 = vunpack.c.h.b16 %v245
        %v269 = vunpack.c.l.b16 %v246
        %v270 = vunpack.c.h.b16 %v246
        %v271 = vunpack.c.l.b16 %v247
        %v272 = vunpack.c.h.b16 %v247
        %v273 = vunpack.c.l.b16 %v248
        %v274 = vunpack.c.h.b16 %v248
        %v275 = vunpack.c.l.b16 %v249
        %v276 = vunpack.c.h.b16 %v249
        %v277 = vpack.c.b16 %v261, %v259
        %v278 = vpack.c.b16 %v262, %v260
        %v279 = vpack.c.b16 %v265, %v263
        %v280 = vpack.c.b16 %v266, %v264
        %v281 = vpack.c.b16 %v269, %v267
        %v282 = vpack.c.b16 %v270, %v268
        %v283 = vpack.c.b16 %v273, %v271
        %v284 = vpack.c.b16 %v274, %v272
        %v285 = vpack.c.b16 %v275, %v275
        %v286 = vpack.c.b16 %v276, %v276
        %vm295 = vcmask 588800
        %v297 = vsel %vm295, %v240, 0
        %vm299 = vcmask 1043456
        %v301 = vsel %vm299, %v285, 0
        %v304 = vsel %vm299, %v286, 0
        %306 = vmatprep.subr.bf16.mxu0 %v278
        %307 = vmatpush1.bf16.msra.mxu0 %v277
        %308 = vmatprep.subr.bf16.mxu0 %v280
        %309 = vmatpush1.bf16.msra.mxu0 %v279
        %310 = vmatprep.subr.bf16.mxu0 %v282
        %311 = vmatpush1.bf16.msra.mxu0 %v281
        %312 = vmatprep.subr.bf16.mxu0 %v284
        %313 = vmatpush1.bf16.msra.mxu0 %v283
        %314 = vmatprep.subr.bf16.mxu0 %v304
        %315 = vmatpush1.bf16.msra.mxu0 %v301
        %316 = vmatprep.subr.bf16.mxu0 0
        %317 = vmatpush1.bf16.msra.mxu0 0
        %318 = vmatprep.subr.bf16.mxu0 0
        %319 = vmatpush1.bf16.msra.mxu0 0
        %320 = vmatprep.subr.bf16.mxu0 0
        %321 = vmatpush1.bf16.msra.mxu0 0
        %322 = vmatprep.subr.bf16.mxu0 0
        %323 = vmatpush1.bf16.msra.mxu0 0
        %324 = vmatprep.subr.bf16.mxu0 0
        %325 = vmatpush1.bf16.msra.mxu0 0
        %326 = vmatprep.subr.bf16.mxu0 0
        %327 = vmatpush1.bf16.msra.mxu0 0
        %328 = vmatprep.subr.bf16.mxu0 0
        %329 = vmatpush1.bf16.msra.mxu0 0
        %330 = vmatprep.subr.bf16.mxu0 0
        %331 = vmatpush1.bf16.msra.mxu0 0
        %332 = vmatprep.subr.bf16.mxu0 0
        %333 = vmatpush1.bf16.msra.mxu0 0
        %334 = vmatprep.subr.bf16.mxu0 0
        %335 = vmatpush1.bf16.msra.mxu0 0
        %336 = vmatprep.subr.bf16.mxu0 0
        %337 = vmatpush1.bf16.msra.mxu0 0
        %338 = vmatprep.mubr.bf16.mxu0 0
        %339 = vmatmul.mubr.bf16.gmra.mrb[0].mxu0 %v297
        %v340 = vpop.f32.mrb[0].mxu0
        %v341 = vadd.f32 0.0, %v340
        %v342 = vpop.f32.mrb[0].mxu0
        %v343 = vadd.f32 0.0, %v342
        %v344 = vpop.f32.mrb[0].mxu0
        %v345 = vpop.f32.mrb[0].mxu0
        %346 = vdwg.mxu0
        %v347 = vpack.c.bf16 %v341, %v341
        %v348 = vpack.c.bf16 %v343, %v343
        %v351 = vcombine.low %v347, %v348
        %v353 = vunpack.c.l.s4 1983009808
        %v354 = vunpack.c.0.s8 %v353
        %v355 = vlaneseq
        %v356 = vshrl.u32 %v355, 7
        %v357 = vsub.s32 %v354, %v356
        %v358 = vrot.slane %v351, %v357
        %360 = vst [vmem:[%s216] sm:$0xf] %v358
        %v361 = vsel %vm299, %v341, 0.0
        %v362 = vsel %vm299, %v343, 0.0
        %v363 = vadd.f32 %v361, %v362
        %364 = vadd.xlane.f32.xlu0 %v363
        %v365 = vpop.xlane.xlu0 %364
        %vm366 = vcmask 3072
        %367 = vst.msk [vmem:[%s234] sm:$0xf] %vm366, %v365
        %v368 = vmul.f32 %v341, %v341
        %v369 = vmul.f32 %v343, %v343
        %v370 = vsel %vm299, %v368, 0.0
        %v371 = vsel %vm299, %v369, 0.0
        %v372 = vadd.f32 %v370, %v371
        %373 = vadd.xlane.f32.xlu0 %v372
        %v374 = vpop.xlane.xlu0 %373
        %375 = vst.msk [vmem:[%s238] sm:$0xf] %vm366, %v374
        %s376 = sand.u32 %s77, 1
        %s377 = scalar_lea.sflag [#allocation4], %s376
        %s378 = sand.u32 %s77, 1
        %s379 = smul.addr %s378, 4
        %s380 = scalar_lea.vmem [#allocation5], %s379
        %p381 = scmp.lt.s32.totalorder %s22, 1
        %s382 = scalar_select %p381, %s22, 1
        %s383 = smul.addr %s382, 4
        %s384 = scalar_lea.vmem %s3, %s383
        %p385 = scmp.lt.s32.totalorder %s22, 1
        %s386 = scalar_select %p385, %s22, 1
        %s387 = smul.addr %s386, 4
        %s388 = scalar_lea.vmem %s4, %s387
        // Predicated region
        $region33: #{tpu_custom_call.1} parent=27 // pred_check
          %p389 = pneg %p87
        $region34: #{tpu_custom_call.1} parent=27 // pred_check_branch
          %391 = sbr.rel (%p389) target = $region36
        $region35: #{tpu_custom_call.1} parent=27 // pred_region
          %s392 = smul.u32 2, %s22
          %s394 = ssub.s32 64, 64
          %395 = vsyncadd %s377, %s394
          %s396 = smul.addr %s392, 32
          %s397 = scalar_lea.hbm %s2, %s396
          %s399 = sshll.u32 %s380, 4
          %s400 = int_to_ptr.vmem [resolvable:$true] %s399
          %402 = dma.vmem_to_hbm [thread:$0]  %s400, 64, %s397, %s377
        $region36: #{tpu_custom_call.1} parent=27 // pred_fallthru
          _
        // Predicated region
        $region37: #{tpu_custom_call.1} parent=27 // pred_check
          %p403 = pneg %p113
        $region38: #{tpu_custom_call.1} parent=27 // pred_check_branch
          %405 = sbr.rel (%p403) target = $region40
        $region39: #{tpu_custom_call.1} parent=27 // pred_region
          _
        $region40: #{tpu_custom_call.1} parent=27 // pred_fallthru
          _
        // Predicated region
        $region41: #{tpu_custom_call.1} parent=27 // pred_check
          %p406 = pneg %p139
        $region42: #{tpu_custom_call.1} parent=27 // pred_check_branch
          %408 = sbr.rel (%p406) target = $region44
        $region43: #{tpu_custom_call.1} parent=27 // pred_region
          _
        $region44: #{tpu_custom_call.1} parent=27 // pred_fallthru
          _
      $region28: #{tpu_custom_call.1} parent=5 // pred_fallthru
        _
      %p409 = scmp.le.s32.totalorder 2, %s17
      // Predicated region
      $region45: #{tpu_custom_call.1} parent=5 // pred_check
        %p410 = pneg %p409
      $region46: #{tpu_custom_call.1} parent=5 // pred_check_branch
        %412 = sbr.rel (%p410) target = $region48
      $region47: #{tpu_custom_call.1} parent=5 // pred_region
        %s413 = ssub.s32 %s17, 2
        // Predicated region
        $region49: #{tpu_custom_call.1} parent=47 // pred_check
          %p414 = pneg %p93
        $region50: #{tpu_custom_call.1} parent=47 // pred_check_branch
          %416 = sbr.rel (%p414) target = $region52
        $region51: #{tpu_custom_call.1} parent=47 // pred_region
          %s417 = sand.u32 %s78, 1
          %s418 = scalar_lea.sflag [#allocation4], %s417
          %s419 = sand.u32 %s78, 1
          %s420 = smul.addr %s419, 4
          %s421 = scalar_lea.vmem [#allocation5], %s420
          %422 = dma.done %s418, 64
        $region52: #{tpu_custom_call.1} parent=47 // pred_fallthru
          _
        // Predicated region
        $region53: #{tpu_custom_call.1} parent=47 // pred_check
          %p423 = pneg %p119
        $region54: #{tpu_custom_call.1} parent=47 // pred_check_branch
          %425 = sbr.rel (%p423) target = $region56
        $region55: #{tpu_custom_call.1} parent=47 // pred_region
          %p426 = scmp.lt.s32.totalorder %s23, 1
          %s427 = scalar_select %p426, %s23, 1
          %s428 = smul.addr %s427, 4
          %s429 = scalar_lea.vmem %s3, %s428
        $region56: #{tpu_custom_call.1} parent=47 // pred_fallthru
          _
        // Predicated region
        $region57: #{tpu_custom_call.1} parent=47 // pred_check
          %p430 = pneg %p145
        $region58: #{tpu_custom_call.1} parent=47 // pred_check_branch
          %432 = sbr.rel (%p430) target = $region60
        $region59: #{tpu_custom_call.1} parent=47 // pred_region
          %p433 = scmp.lt.s32.totalorder %s23, 1
          %s434 = scalar_select %p433, %s23, 1
          %s435 = smul.addr %s434, 4
          %s436 = scalar_lea.vmem %s4, %s435
        $region60: #{tpu_custom_call.1} parent=47 // pred_fallthru
          _
      $region48: #{tpu_custom_call.1} parent=5 // pred_fallthru
        _
    $region6: #{tpu_custom_call.1} parent=1 // loop_footer
      %s21 = sadd.s32 1, %s17
    $region7: #{tpu_custom_call.1} parent=1 // loop_footer_branch
      %16 = sbr.rel target = $region3
    $region8: #{tpu_custom_call.1} parent=1 // loop_exit
      _
    %437 = vsyncpa [#allocation3], 1
    %s438 = scalar_lea.sflag [#allocation3], 1
    %439 = vsyncpa %s438, 1
    %440 = vsyncpa [#allocation4], 1
    %s441 = scalar_lea.sflag [#allocation4], 1
    %442 = vsyncpa %s441, 1

</llo_original>
